<compile_context>
chip_gen: v7x
topology: tpu7x:2x2x1
jax: 0.10.0
libtpu: 0.0.40
codegen_flags: <defaults>
</compile_context>

<pallas_src>
import functools

import jax
import jax.numpy as jnp
from jax import lax
from jax.experimental import pallas as pl
from jax.experimental.pallas import tpu as pltpu


def _edge_emb_kernel(x_ref, w_ref, wsum_ref, g_ref, o_ref, *, eps, neg_slope):
    """One row-tile: Linear(no bias) -> InstanceNorm(over hidden) -> LeakyReLU."""
    x = x_ref[...]                                                    # (tm, D_in)
    # Linear: native-dtype operands on the MXU, f32 accumulation.
    h = jnp.dot(x, w_ref[...], preferred_element_type=jnp.float32)   # (tm, D_h)

    # Row moments from the narrow x side (identical math to sum(h)/sum(h*h)
    # because h = x @ W^T):
    #   s1 = rowsum(x * colsum(W^T)),  s2 = rowsum((x @ (W^T W)) * x)
    # All moment work stays in the 17-lane domain (no full-width h*h, no
    # 256-lane reductions).
    xf = x.astype(jnp.float32)
    s1 = jnp.sum(xf * wsum_ref[...], axis=-1, keepdims=True)          # (tm, 1)
    xg = jnp.dot(x, g_ref[...], preferred_element_type=jnp.float32)   # (tm, D_in)
    s2 = jnp.sum(xg * xf, axis=-1, keepdims=True)                     # (tm, 1)

    inv_d = jnp.float32(1.0 / h.shape[-1])
    mean = s1 * inv_d
    var = jnp.maximum(s2 * inv_d - mean * mean, 0.0)   # biased variance, clamped
    scale = lax.rsqrt(var + eps)                       # (tm, 1), strictly > 0

    # Fused normalize + LeakyReLU (scale > 0 so sign((h-mean)*scale) == sign(h-mean)):
    m = jnp.where(h >= mean, scale, neg_slope * scale)
    o_ref[...] = ((h - mean) * m).astype(o_ref.dtype)


def prepare_edge_emb_weights(weight):
    """Hoistable weight-side preprocessing (call once when the weight is reused).

    weight: (D_h, D_in) in PyTorch nn.Linear layout (out_features, in_features).
    Returns (w_t, wsum, gram):
      w_t  (D_in, D_h)  MXU operand, kept in the weight's native dtype
      wsum (1, D_in)    f32 column sums of W^T   (for s1 = rowsum(x * wsum))
      gram (D_in, D_in) f32 (W^T) @ (W^T)^T      (for s2 = rowsum((x @ G) * x))
    """
    w_t = jnp.transpose(weight)
    w_f32 = w_t.astype(jnp.float32)
    wsum = jnp.sum(w_f32, axis=1)[None, :]
    gram = w_f32 @ w_f32.T
    return w_t, wsum, gram


def _round_up(n, m):
    return ((n + m - 1) // m) * m


def _pick_row_tile(M, tm_max):
    """Row tile: multiple of 8 (sublanes), large enough to amortize the ~0.35us
    per-grid-step overhead, small enough to stay in the scoped-VMEM budget and
    to leave >= 2 grid steps (when M allows) so the 'parallel' axis can shard
    across v7x's two TensorCores."""
    tm = min(tm_max, max(8, _round_up(M, 8)))
    if M > 8 and pl.cdiv(M, tm) < 2:
        tm = max(8, _round_up(pl.cdiv(M, 2), 8))
    return tm


def edge_emb_layer(edge_feat, weight, *, prepared=None, tm=1024, eps=1e-5,
                   neg_slope=0.01, out_dtype=None):
    """edge_feat: (B, E, D_in); weight: (D_h, D_in) (PyTorch Linear layout).

    prepared:  optional result of prepare_edge_emb_weights(weight) to hoist the
               weight-side preprocessing out of the per-call path.
    out_dtype: set to jnp.bfloat16 to halve the (dominant) output writeback.
    tm:        max row tile; 1024 by default (2048 is a v6e-only option --
               re-budget VMEM before porting it to v7x).
    """
    B, E, D_in = edge_feat.shape
    D_h = weight.shape[0]
    M = B * E
    if out_dtype is None:
        out_dtype = edge_feat.dtype

    w_t, wsum, gram = (prepared if prepared is not None
                       else prepare_edge_emb_weights(weight))

    tm = _pick_row_tile(M, tm)
    grid = (pl.cdiv(M, tm),)

    # No pad / crop: Pallas handles the ragged last row-block.  Tail rows of
    # the input tile hold stale VMEM data, but every op is row-independent and
    # the out-of-bounds portion of the output write is masked, so they never
    # reach HBM.  (Keep it that way: no cross-row reductions in the kernel.)
    x = edge_feat.reshape(M, D_in)

    kernel = functools.partial(_edge_emb_kernel, eps=eps, neg_slope=neg_slope)

    out = pl.pallas_call(
        kernel,
        out_shape=jax.ShapeDtypeStruct((M, D_h), out_dtype),
        grid_spec=pltpu.PrefetchScalarGridSpec(
            num_scalar_prefetch=0,
            grid=grid,
            in_specs=[
                pl.BlockSpec((tm, D_in), lambda i: (i, 0)),
                # Constant index maps: weight-side tiles are fetched once and
                # stay resident across grid steps.
                pl.BlockSpec((D_in, D_h), lambda i: (0, 0)),
                pl.BlockSpec((1, D_in), lambda i: (0, 0)),
                pl.BlockSpec((D_in, D_in), lambda i: (0, 0)),
            ],
            out_specs=pl.BlockSpec((tm, D_h), lambda i: (i, 0)),
        ),
        compiler_params=pltpu.CompilerParams(
            dimension_semantics=("parallel",),
            # Explicit budget: at tm=1024 f32 the double-buffered x/out tiles,
            # resident weights, and the f32 h + epilogue temporaries stay well
            # under 32 MiB, which is also inside v7x's 64 MiB physical VMEM.
            vmem_limit_bytes=32 * 1024 * 1024,
        ),
    )(x, w_t, wsum, gram)

    return out.reshape(B, E, D_h)


def edge_emb_layer_ref(edge_feat, weight, *, eps=1e-5, neg_slope=0.01):
    """Pure-JAX reference mirroring the PyTorch module (two-pass variance)."""
    h = jnp.einsum("bei,hi->beh", edge_feat, weight).astype(jnp.float32)
    mean = jnp.mean(h, axis=-1, keepdims=True)
    var = jnp.mean((h - mean) ** 2, axis=-1, keepdims=True)
    hn = (h - mean) / jnp.sqrt(var + eps)
    return jnp.where(hn >= 0, hn, neg_slope * hn).astype(edge_feat.dtype)


if __name__ == "__main__":
    # Module defaults: edge_emb_in=17, node_emb_h=256.
    D_in, D_h = 17, 256

    key = jax.random.PRNGKey(0)
    k_x, k_w, k_x2 = jax.random.split(key, 3)

    bound = 1.0 / (D_in ** 0.5)
    weight = jax.random.uniform(
        k_w, (D_h, D_in), dtype=jnp.float32, minval=-bound, maxval=bound
    )
    prepared = prepare_edge_emb_weights(weight)

    # Shape 1: B*E = 15 is NOT a multiple of 8 -> exercises the ragged last
    # block and the >=2-grid-step (two-TensorCore) path.
    B, E = 3, 5
    edge_feat = jax.random.normal(k_x, (B, E, D_in), dtype=jnp.float32)
    out = jax.block_until_ready(edge_emb_layer(edge_feat, weight, prepared=prepared))
    ref = edge_emb_layer_ref(edge_feat, weight)
    assert out.shape == (B, E, D_h)
    assert jnp.allclose(out, ref, atol=1e-4, rtol=1e-4), "f32 mismatch vs reference"

    # Shape 2: multiple row tiles with a ragged tail (M = 148).
    B2, E2 = 4, 37
    edge_feat2 = jax.random.normal(k_x2, (B2, E2, D_in), dtype=jnp.float32)
    out2 = jax.block_until_ready(edge_emb_layer(edge_feat2, weight, prepared=prepared))
    ref2 = edge_emb_layer_ref(edge_feat2, weight)
    assert jnp.allclose(out2, ref2, atol=1e-4, rtol=1e-4), "f32 mismatch (shape 2)"

    # bf16 output path (halves the dominant writeback stream); loose tolerance.
    out_bf16 = jax.block_until_ready(
        edge_emb_layer(edge_feat, weight, prepared=prepared, out_dtype=jnp.bfloat16)
    )
    assert out_bf16.dtype == jnp.bfloat16
    assert jnp.allclose(out_bf16.astype(jnp.float32), ref, atol=5e-2, rtol=5e-2), \
        "bf16 output mismatch vs reference"

    print("KERNEL_OK")
</pallas_src>

<mosaic_0001>
module attributes {stable_mosaic.version = 11 : i64} {
  func.func @_edge_emb_kernel(%arg0: i32, %arg1: memref<8x17xf32, #tpu.memory_space<vmem>>, %arg2: memref<17x256xf32, #tpu.memory_space<vmem>>, %arg3: memref<1x17xf32, #tpu.memory_space<vmem>>, %arg4: memref<17x17xf32, #tpu.memory_space<vmem>>, %arg5: memref<8x256xf32, #tpu.memory_space<vmem>>) attributes {dimension_semantics = [#tpu.dimension_semantics<parallel>], iteration_bounds = array<i64: 2>, scalar_prefetch = 0 : i64, scratch_operands = 0 : i64, tpu.core_type = #tpu.core_type<tc>, window_params = [{transform_indices = @transform_0, window_bounds = array<i64: 8, 17>}, {pipeline_mode = #tpu.pipeline_mode<synchronous>, transform_indices = @transform_1, window_bounds = array<i64: 17, 256>}, {pipeline_mode = #tpu.pipeline_mode<synchronous>, transform_indices = @transform_2, window_bounds = array<i64: 1, 17>}, {pipeline_mode = #tpu.pipeline_mode<synchronous>, transform_indices = @transform_3, window_bounds = array<i64: 17, 17>}, {transform_indices = @transform_4, window_bounds = array<i64: 8, 256>}]} {
    %c0 = arith.constant 0 : index
    %c0_0 = arith.constant 0 : index
    %0 = vector.load %arg1[%c0, %c0_0] : memref<8x17xf32, #tpu.memory_space<vmem>>, vector<8x17xf32>
    %c0_1 = arith.constant 0 : index
    %c0_2 = arith.constant 0 : index
    %1 = vector.load %arg2[%c0_1, %c0_2] : memref<17x256xf32, #tpu.memory_space<vmem>>, vector<17x256xf32>
    %cst = arith.constant dense<0.000000e+00> : vector<8x256xf32>
    %2 = tpu.matmul %0, %1, %cst {dimension_numbers = #tpu.dot_dimension_numbers<[1], [0], [0], [1], [0, 0, 1, 1], [], []>} : vector<8x17xf32>, vector<17x256xf32>, vector<8x256xf32> -> vector<8x256xf32>
    %c0_3 = arith.constant 0 : index
    %c0_4 = arith.constant 0 : index
    %3 = vector.load %arg3[%c0_3, %c0_4] : memref<1x17xf32, #tpu.memory_space<vmem>>, vector<1x17xf32>
    %4 = vector.broadcast %3 : vector<1x17xf32> to vector<8x17xf32>
    %5 = arith.mulf %0, %4 : vector<8x17xf32>
    %cst_5 = arith.constant dense<0.000000e+00> : vector<8xf32>
    %6 = vector.multi_reduction <add>, %5, %cst_5 [1] : vector<8x17xf32> to vector<8xf32>
    %7 = vector.shape_cast %6 : vector<8xf32> to vector<8x1xf32>
    %c0_6 = arith.constant 0 : index
    %c0_7 = arith.constant 0 : index
    %8 = vector.load %arg4[%c0_6, %c0_7] : memref<17x17xf32, #tpu.memory_space<vmem>>, vector<17x17xf32>
    %cst_8 = arith.constant dense<0.000000e+00> : vector<8x17xf32>
    %9 = tpu.matmul %0, %8, %cst_8 {dimension_numbers = #tpu.dot_dimension_numbers<[1], [0], [0], [1], [0, 0, 1, 1], [], []>} : vector<8x17xf32>, vector<17x17xf32>, vector<8x17xf32> -> vector<8x17xf32>
    %10 = arith.mulf %9, %0 : vector<8x17xf32>
    %cst_9 = arith.constant dense<0.000000e+00> : vector<8xf32>
    %11 = vector.multi_reduction <add>, %10, %cst_9 [1] : vector<8x17xf32> to vector<8xf32>
    %12 = vector.shape_cast %11 : vector<8xf32> to vector<8x1xf32>
    %cst_10 = arith.constant 3.906250e-03 : f32
    %13 = vector.broadcast %cst_10 : f32 to vector<8x1xf32>
    %14 = arith.mulf %7, %13 : vector<8x1xf32>
    %cst_11 = arith.constant 3.906250e-03 : f32
    %15 = vector.broadcast %cst_11 : f32 to vector<8x1xf32>
    %16 = arith.mulf %12, %15 : vector<8x1xf32>
    %17 = arith.mulf %14, %14 : vector<8x1xf32>
    %18 = arith.subf %16, %17 : vector<8x1xf32>
    %cst_12 = arith.constant 0.000000e+00 : f32
    %19 = vector.broadcast %cst_12 : f32 to vector<8x1xf32>
    %20 = arith.maximumf %18, %19 : vector<8x1xf32>
    %cst_13 = arith.constant 9.99999974E-6 : f32
    %21 = vector.broadcast %cst_13 : f32 to vector<8x1xf32>
    %22 = arith.addf %20, %21 : vector<8x1xf32>
    %23 = math.rsqrt %22 : vector<8x1xf32>
    %24 = vector.broadcast %14 : vector<8x1xf32> to vector<8x256xf32>
    %25 = arith.cmpf oge, %2, %24 : vector<8x256xf32>
    %cst_14 = arith.constant 0.00999999977 : f32
    %26 = vector.broadcast %cst_14 : f32 to vector<8x1xf32>
    %27 = arith.mulf %26, %23 : vector<8x1xf32>
    %28 = vector.shape_cast %23 : vector<8x1xf32> to vector<8x1xf32>
    %29 = vector.broadcast %28 : vector<8x1xf32> to vector<8x256xf32>
    %30 = vector.shape_cast %27 : vector<8x1xf32> to vector<8x1xf32>
    %31 = vector.broadcast %30 : vector<8x1xf32> to vector<8x256xf32>
    %32 = arith.select %25, %29, %31 : vector<8x256xi1>, vector<8x256xf32>
    %33 = vector.broadcast %14 : vector<8x1xf32> to vector<8x256xf32>
    %34 = arith.subf %2, %33 : vector<8x256xf32>
    %35 = arith.mulf %34, %32 : vector<8x256xf32>
    %c0_15 = arith.constant 0 : index
    %c0_16 = arith.constant 0 : index
    %36 = vector.load %arg5[%c0_15, %c0_16] : memref<8x256xf32, #tpu.memory_space<vmem>>, vector<8x256xf32>
    tpu.vector_store %arg5[%c0_15, %c0_16], %35 {strides = array<i32>} : memref<8x256xf32, #tpu.memory_space<vmem>>, vector<8x256xf32>,
    return
  }
  func.func @transform_0(%arg0: i32) -> (i32, i32) {
    %c0_i32 = arith.constant 0 : i32
    %c0_i32_0 = arith.constant 0 : i32
    return %arg0, %c0_i32 : i32, i32
  }
  func.func @transform_1(%arg0: i32) -> (i32, i32) {
    %c0_i32 = arith.constant 0 : i32
    %c0_i32_0 = arith.constant 0 : i32
    %c0_i32_1 = arith.constant 0 : i32
    return %c0_i32, %c0_i32_0 : i32, i32
  }
  func.func @transform_2(%arg0: i32) -> (i32, i32) {
    %c0_i32 = arith.constant 0 : i32
    %c0_i32_0 = arith.constant 0 : i32
    %c0_i32_1 = arith.constant 0 : i32
    return %c0_i32, %c0_i32_0 : i32, i32
  }
  func.func @transform_3(%arg0: i32) -> (i32, i32) {
    %c0_i32 = arith.constant 0 : i32
    %c0_i32_0 = arith.constant 0 : i32
    %c0_i32_1 = arith.constant 0 : i32
    return %c0_i32, %c0_i32_0 : i32, i32
  }
  func.func @transform_4(%arg0: i32) -> (i32, i32) {
    %c0_i32 = arith.constant 0 : i32
    %c0_i32_0 = arith.constant 0 : i32
    return %arg0, %c0_i32 : i32, i32
  }
}

</mosaic_0001>

<llo_original>
// kernel: tpu_custom_call.1
$region0: #{tpu_custom_call.1}
  #allocation0 [shape = 'u32[]', space=smem, size = 0x4, offset = 0x4, fixed_abs, tag = 'smem constant byte address 0x4 - core index']
  #allocation1 [shape = 'u32[144,128]{1,0:T(1,128)}', space=vmem, size = 0x12000, scoped, tag = 'internal scratch']
  %s0 = inlined_call_operand.hbm [shape: f32[15,17], index: 0, kind: input, shape index: {}]
  %s1 = inlined_call_operand.hbm [shape: f32[17,256], index: 1, kind: input, shape index: {}]
  %s2 = inlined_call_operand.vmem [shape: f32[1,17], index: 2, kind: input, shape index: {}]
  %s3 = inlined_call_operand.hbm [shape: f32[17,17], index: 3, kind: input, shape index: {}]
  %s4 = inlined_call_operand.hbm [shape: f32[15,256], index: 4, kind: output, shape index: {}]
  %s5 = sld [smem:[#allocation0]]
  $region61: #{tpu_custom_call.1} parent=0
    _
  %s7 = ssub.s32 1, %s5
  %s8 = scalar_select 0, %s7, %s5
  $region1: #{tpu_custom_call.1} parent=0
    #allocation2 [shape = 'u8[8192]{0}', space=vmem, size = 0x2000, scoped, tag = 'input window, operand 0']
    #allocation3 [shape = 's32[2]{0}', space=sflag, size = 0x8, scoped, tag = 'scoped memory for tpu_custom_call.1']
    #allocation4 [shape = 's32[2]{0}', space=sflag, size = 0x8, scoped, tag = 'scoped memory for tpu_custom_call.1']
    #allocation5 [shape = 'u8[24576]{0}', space=vmem, size = 0x6000, scoped, tag = 'input window, operand 1, single buffered']
    #allocation6 [shape = 's32[1]{0}', space=sflag, size = 0x4, scoped, tag = 'scoped memory for tpu_custom_call.1']
    #allocation7 [shape = 'u8[12288]{0}', space=vmem, size = 0x3000, scoped, tag = 'input window, operand 3, single buffered']
    #allocation8 [shape = 'u8[16384]{0}', space=vmem, size = 0x4000, scoped, tag = 'output window, operand 0']
    %9 = vsyncpa [#allocation3], 0
    %s10 = scalar_lea.sflag [#allocation3], 1
    %11 = vsyncpa %s10, 0
    %12 = vsyncpa [#allocation6], 0
    %13 = vsyncpa [#allocation4], 0
    %s14 = scalar_lea.sflag [#allocation4], 1
    %15 = vsyncpa %s14, 0
    loop: start=0, step=1, limit=4
    $region2: #{tpu_custom_call.1} parent=1 // loop_pre_header
      _
    $region3: #{tpu_custom_call.1} parent=1 // loop_header
      %s17 = sphi 0, %s21
      %p18 = scmp.ge.s32.totalorder %s17, 4
      %s27 = sphi 0, %s29
      %s30 = sphi 0, %s27
      %s31 = sphi 0, %s30
      %s47 = sphi 0, %s31
      %s51 = sphi 0, %s51
      %s53 = sphi 0, %s51
      %s54 = sphi 0, %s53
      %s68 = sphi 0, %s54
      %s72 = sphi 0, %s72
      %s74 = sphi 0, %s72
      %s75 = sphi 0, %s74
      %s89 = sphi 0, %s75
      %s93 = sphi 0, %s93
      %s95 = sphi 0, %s93
      %s96 = sphi 0, %s95
      %s110 = sphi 0, %s96
      %s116 = sphi 0, %s118
      %s119 = sphi 0, %s116
      %s120 = sphi 0, %s119
      %s136 = sphi 0, %s120
    $region4: #{tpu_custom_call.1} parent=1 // loop_header_branch
      %20 = sbr.rel (%p18) target = $region8
    $region5: #{tpu_custom_call.1} parent=1 // loop_body
      %s22 = ssub.s32 %s17, 1
      %s23 = ssub.s32 %s17, 2
      %s24 = sadd.s32 %s17, 1
      %s25 = ssub.s32 %s17, %s24
      %p26 = scmp.eq.s32.totalorder %s25, 0
      %s28 = sadd.s32 %s27, 1
      %s29 = scalar_select %p26, %s27, %s28
      %p32 = pneg %p26
      %p33 = scmp.eq.s32.totalorder %s17, 1
      %p34 = por %p32, %p33
      %p35 = scmp.ne.s32.totalorder %s27, %s30
      %p36 = scmp.eq.s32.totalorder %s17, 0
      %p37 = por %p35, %p36
      %p38 = scmp.ne.s32.totalorder %s27, %s30
      %p39 = scmp.eq.s32.totalorder %s22, 1
      %p40 = por %p38, %p39
      %p41 = scmp.ne.s32.totalorder %s30, %s31
      %p42 = scmp.eq.s32.totalorder %s22, 0
      %p43 = por %p41, %p42
      %p44 = scmp.ne.s32.totalorder %s30, %s31
      %p45 = scmp.eq.s32.totalorder %s23, 1
      %p46 = por %p44, %p45
      %p48 = scmp.ne.s32.totalorder %s31, %s47
      %p49 = scmp.eq.s32.totalorder %s23, 0
      %p50 = por %p48, %p49
      %s52 = sadd.s32 %s51, 1
      %p55 = scmp.eq.s32.totalorder %s17, 1
      %p56 = scmp.ne.s32.totalorder %s51, %s53
      %p57 = scmp.eq.s32.totalorder %s17, 0
      %p58 = por %p56, %p57
      %p59 = scmp.ne.s32.totalorder %s51, %s53
      %p60 = scmp.eq.s32.totalorder %s22, 1
      %p61 = por %p59, %p60
      %p62 = scmp.ne.s32.totalorder %s53, %s54
      %p63 = scmp.eq.s32.totalorder %s22, 0
      %p64 = por %p62, %p63
      %p65 = scmp.ne.s32.totalorder %s53, %s54
      %p66 = scmp.eq.s32.totalorder %s23, 1
      %p67 = por %p65, %p66
      %p69 = scmp.ne.s32.totalorder %s54, %s68
      %p70 = scmp.eq.s32.totalorder %s23, 0
      %p71 = por %p69, %p70
      %s73 = sadd.s32 %s72, 1
      %p76 = scmp.eq.s32.totalorder %s17, 1
      %p77 = scmp.ne.s32.totalorder %s72, %s74
      %p78 = scmp.eq.s32.totalorder %s17, 0
      %p79 = por %p77, %p78
      %p80 = scmp.ne.s32.totalorder %s72, %s74
      %p81 = scmp.eq.s32.totalorder %s22, 1
      %p82 = por %p80, %p81
      %p83 = scmp.ne.s32.totalorder %s74, %s75
      %p84 = scmp.eq.s32.totalorder %s22, 0
      %p85 = por %p83, %p84
      %p86 = scmp.ne.s32.totalorder %s74, %s75
      %p87 = scmp.eq.s32.totalorder %s23, 1
      %p88 = por %p86, %p87
      %p90 = scmp.ne.s32.totalorder %s75, %s89
      %p91 = scmp.eq.s32.totalorder %s23, 0
      %p92 = por %p90, %p91
      %s94 = sadd.s32 %s93, 1
      %p97 = scmp.eq.s32.totalorder %s17, 1
      %p98 = scmp.ne.s32.totalorder %s93, %s95
      %p99 = scmp.eq.s32.totalorder %s17, 0
      %p100 = por %p98, %p99
      %p101 = scmp.ne.s32.totalorder %s93, %s95
      %p102 = scmp.eq.s32.totalorder %s22, 1
      %p103 = por %p101, %p102
      %p104 = scmp.ne.s32.totalorder %s95, %s96
      %p105 = scmp.eq.s32.totalorder %s22, 0
      %p106 = por %p104, %p105
      %p107 = scmp.ne.s32.totalorder %s95, %s96
      %p108 = scmp.eq.s32.totalorder %s23, 1
      %p109 = por %p107, %p108
      %p111 = scmp.ne.s32.totalorder %s96, %s110
      %p112 = scmp.eq.s32.totalorder %s23, 0
      %p113 = por %p111, %p112
      %s114 = ssub.s32 %s17, %s24
      %p115 = scmp.eq.s32.totalorder %s114, 0
      %s117 = sadd.s32 %s116, 1
      %s118 = scalar_select %p115, %s116, %s117
      %p121 = pneg %p115
      %p122 = scmp.eq.s32.totalorder %s17, 1
      %p123 = por %p121, %p122
      %p124 = scmp.ne.s32.totalorder %s116, %s119
      %p125 = scmp.eq.s32.totalorder %s17, 0
      %p126 = por %p124, %p125
      %p127 = scmp.ne.s32.totalorder %s116, %s119
      %p128 = scmp.eq.s32.totalorder %s22, 1
      %p129 = por %p127, %p128
      %p130 = scmp.ne.s32.totalorder %s119, %s120
      %p131 = scmp.eq.s32.totalorder %s22, 0
      %p132 = por %p130, %p131
      %p133 = scmp.ne.s32.totalorder %s119, %s120
      %p134 = scmp.eq.s32.totalorder %s23, 1
      %p135 = por %p133, %p134
      %p137 = scmp.ne.s32.totalorder %s120, %s136
      %p138 = scmp.eq.s32.totalorder %s23, 0
      %p139 = por %p137, %p138
      %p140 = scmp.le.s32.totalorder 1, %s17
      %p141 = scmp.lt.s32.totalorder %s17, 3
      %p142 = pnand %p140, %p141
      %p143 = pneg %p142
      // Predicated region
      $region9: #{tpu_custom_call.1} parent=5 // pred_check
        _
      $region10: #{tpu_custom_call.1} parent=5 // pred_check_branch
        %145 = sbr.rel (%p142) target = $region12
      $region11: #{tpu_custom_call.1} parent=5 // pred_region
        %s146 = ssub.s32 %s17, 1
        // Predicated region
        $region13: #{tpu_custom_call.1} parent=11 // pred_check
          %p147 = pneg %p64
        $region14: #{tpu_custom_call.1} parent=11 // pred_check_branch
          %149 = sbr.rel (%p147) target = $region16
        $region15: #{tpu_custom_call.1} parent=11 // pred_region
          %s151 = ssub.s32 768, 768
          %152 = vsyncadd [#allocation6], %s151
          %s153 = sshll.u32 [#allocation5], 4
          %s154 = int_to_ptr.vmem [resolvable:$true] %s153
          %159 = dma.hbm_to_vmem [thread:$0]  %s1, 768, %s154, [#allocation6], 256, 256, 16
        $region16: #{tpu_custom_call.1} parent=11 // pred_fallthru
          _
        // Predicated region
        $region17: #{tpu_custom_call.1} parent=11 // pred_check
          %p160 = pneg %p85
        $region18: #{tpu_custom_call.1} parent=11 // pred_check_branch
          %162 = sbr.rel (%p160) target = $region20
        $region19: #{tpu_custom_call.1} parent=11 // pred_region
          _
        $region20: #{tpu_custom_call.1} parent=11 // pred_fallthru
          _
        // Predicated region
        $region21: #{tpu_custom_call.1} parent=11 // pred_check
          %p163 = pneg %p106
        $region22: #{tpu_custom_call.1} parent=11 // pred_check_branch
          %165 = sbr.rel (%p163) target = $region24
        $region23: #{tpu_custom_call.1} parent=11 // pred_region
          %s167 = ssub.s32 384, 384
          %168 = vsyncadd [#allocation6], %s167
          %s169 = sshll.u32 [#allocation7], 4
          %s170 = int_to_ptr.vmem [resolvable:$true] %s169
          %175 = dma.hbm_to_vmem [thread:$0]  %s3, 384, %s170, [#allocation6], 128, 128, 8
        $region24: #{tpu_custom_call.1} parent=11 // pred_fallthru
          _
      $region12: #{tpu_custom_call.1} parent=5 // pred_fallthru
        _
      %p176 = scmp.lt.s32.totalorder %s17, 2
      // Predicated region
      $region25: #{tpu_custom_call.1} parent=5 // pred_check
        %p177 = pneg %p176
      $region26: #{tpu_custom_call.1} parent=5 // pred_check_branch
        %179 = sbr.rel (%p177) target = $region28
      $region27: #{tpu_custom_call.1} parent=5 // pred_region
        // Predicated region
        $region29: #{tpu_custom_call.1} parent=27 // pred_check
          %p180 = pneg %p37
        $region30: #{tpu_custom_call.1} parent=27 // pred_check_branch
          %182 = sbr.rel (%p180) target = $region32
        $region31: #{tpu_custom_call.1} parent=27 // pred_region
          %s183 = sand.u32 %s27, 1
          %s184 = scalar_lea.sflag [#allocation3], %s183
          %s185 = sand.u32 %s27, 1
          %s186 = smul.addr %s185, 8
          %s187 = scalar_lea.vmem [#allocation2], %s186
          %s189 = ssub.s32 128, 128
          %190 = vsyncadd %s184, %s189
          %s191 = smul.addr %s17, 128
          %s192 = scalar_lea.hbm %s0, %s191
          %s194 = sshll.u32 %s187, 4
          %s195 = int_to_ptr.vmem [resolvable:$true] %s194
          %197 = dma.hbm_to_vmem [thread:$0]  %s192, 128, %s195, %s184
        $region32: #{tpu_custom_call.1} parent=27 // pred_fallthru
          _
      $region28: #{tpu_custom_call.1} parent=5 // pred_fallthru
        _
      %p198 = scmp.le.s32.totalorder 1, %s17
      %p199 = scmp.lt.s32.totalorder %s17, 3
      %p200 = pnand %p198, %p199
      %p201 = pneg %p200
      // Predicated region
      $region33: #{tpu_custom_call.1} parent=5 // pred_check
        _
      $region34: #{tpu_custom_call.1} parent=5 // pred_check_branch
        %203 = sbr.rel (%p200) target = $region36
      $region35: #{tpu_custom_call.1} parent=5 // pred_region
        %s204 = ssub.s32 %s17, 1
        %s205 = sand.u32 %s30, 1
        %s206 = scalar_lea.sflag [#allocation3], %s205
        %s207 = sand.u32 %s30, 1
        %s208 = smul.addr %s207, 8
        %s209 = scalar_lea.vmem [#allocation2], %s208
        // Predicated region
        $region37: #{tpu_custom_call.1} parent=35 // pred_check
          %p210 = pneg %p43
        $region38: #{tpu_custom_call.1} parent=35 // pred_check_branch
          %212 = sbr.rel (%p210) target = $region40
        $region39: #{tpu_custom_call.1} parent=35 // pred_region
          %213 = dma.done %s206, 128
        $region40: #{tpu_custom_call.1} parent=35 // pred_fallthru
          _
        // Predicated region
        $region41: #{tpu_custom_call.1} parent=35 // pred_check
          %p214 = pneg %p64
        $region42: #{tpu_custom_call.1} parent=35 // pred_check_branch
          %216 = sbr.rel (%p214) target = $region44
        $region43: #{tpu_custom_call.1} parent=35 // pred_region
          %217 = dma.done [#allocation6], 768
        $region44: #{tpu_custom_call.1} parent=35 // pred_fallthru
          _
        // Predicated region
        $region45: #{tpu_custom_call.1} parent=35 // pred_check
          %p218 = pneg %p106
        $region46: #{tpu_custom_call.1} parent=35 // pred_check_branch
          %220 = sbr.rel (%p218) target = $region48
        $region47: #{tpu_custom_call.1} parent=35 // pred_region
          %221 = dma.done [#allocation6], 384
        $region48: #{tpu_custom_call.1} parent=35 // pred_fallthru
          _
        %s222 = sand.u32 %s30, 1
        %s223 = scalar_lea.sflag [#allocation3], %s222
        %s224 = sand.u32 %s30, 1
        %s225 = smul.addr %s224, 8
        %s226 = scalar_lea.vmem [#allocation2], %s225
        %p227 = pneg %p43
        %p228 = pneg %p40
        %p229 = pneg %p64
        %p230 = pneg %p61
        %p231 = pneg %p85
        %p232 = pneg %p82
        %p233 = pneg %p106
        %p234 = pneg %p103
        %p235 = pneg %p132
        %p236 = pneg %p129
        %s237 = sand.u32 %s119, 1
        %s238 = scalar_lea.sflag [#allocation4], %s237
        %s239 = sand.u32 %s119, 1
        %s240 = smul.addr %s239, 16
        %s241 = scalar_lea.vmem [#allocation8], %s240
        %v242 = vld [vmem:[%s209] sm:$0xff]
        %v243 = vld [vmem:[#allocation5] sm:$0xff]
        %v244 = vld [vmem:[#allocation5 + $0x8] sm:$0xff]
        %v245 = vld [vmem:[#allocation5 + $0x10] sm:$0xff]
        %v246 = vld [vmem:[#allocation5 + $0x18] sm:$0xff]
        %v247 = vld [vmem:[#allocation5 + $0x20] sm:$0x1]
        %v248 = vld [vmem:[#allocation5 + $0x28] sm:$0x1]
        %vm249 = vcmask 138240
        %v251 = vsel %vm249, %v242, 0
        %vm253 = vcmask 1040384
        %v255 = vsel %vm253, %v247, 0
        %v258 = vsel %vm253, %v248, 0
        %260 = vmatprep.subr.mxu0 %v244
        %261 = vmatpush1.msra.mxu0 %v243
        %262 = vmatprep.subr.mxu0 %v246
        %263 = vmatpush1.msra.mxu0 %v245
        %264 = vmatprep.subr.mxu0 %v258
        %265 = vmatpush1.msra.mxu0 %v255
        %266 = vmatprep.subr.mxu0 0.0
        %267 = vmatpush1.msra.mxu0 0.0
        %268 = vmatprep.subr.mxu0 0.0
        %269 = vmatpush1.msra.mxu0 0.0
        %270 = vmatprep.subr.mxu0 0.0
        %271 = vmatpush1.msra.mxu0 0.0
        %272 = vmatprep.subr.mxu0 0.0
        %273 = vmatpush1.msra.mxu0 0.0
        %274 = vmatprep.subr.mxu0 0.0
        %275 = vmatpush1.msra.mxu0 0.0
        %276 = vmatprep.subr.mxu0 0.0
        %277 = vmatpush1.msra.mxu0 0.0
        %278 = vmatprep.subr.mxu0 0.0
        %279 = vmatpush1.msra.mxu0 0.0
        %280 = vmatprep.subr.mxu0 0.0
        %281 = vmatpush1.msra.mxu0 0.0
        %282 = vmatprep.subr.mxu0 0.0
        %283 = vmatpush1.msra.mxu0 0.0
        %284 = vmatprep.subr.mxu0 0.0
        %285 = vmatpush1.msra.mxu0 0.0
        %286 = vmatprep.subr.mxu0 0.0
        %287 = vmatpush1.msra.mxu0 0.0
        %288 = vmatprep.subr.mxu0 0.0
        %289 = vmatpush1.msra.mxu0 0.0
        %290 = vmatprep.subr.mxu0 0.0
        %291 = vmatpush1.msra.mxu0 0.0
        %292 = vmatprep.subr.mxu0 0.0
        %293 = vmatpush1.msra.mxu0 0.0
        %294 = vmatprep.subr.mxu0 0.0
        %295 = vmatpush1.msra.mxu0 0.0
        %296 = vmatprep.subr.mxu0 0.0
        %297 = vmatpush1.msra.mxu0 0.0
        %298 = vmatprep.subr.mxu0 0.0
        %299 = vmatpush1.msra.mxu0 0.0
        %300 = vmatprep.subr.mxu0 0.0
        %301 = vmatpush1.msra.mxu0 0.0
        %302 = vmatprep.subr.mxu0 0.0
        %303 = vmatpush1.msra.mxu0 0.0
        %304 = vmatprep.subr.mxu0 0.0
        %305 = vmatpush1.msra.mxu0 0.0
        %306 = vmatprep.subr.mxu0 0.0
        %307 = vmatpush1.msra.mxu0 0.0
        %308 = vmatprep.subr.mxu0 0.0
        %309 = vmatpush1.msra.mxu0 0.0
        %310 = vmatprep.subr.mxu0 0.0
        %311 = vmatpush1.msra.mxu0 0.0
        %312 = vmatprep.subr.mxu0 0.0
        %313 = vmatpush1.msra.mxu0 0.0
        %314 = vmatprep.subr.mxu0 0.0
        %315 = vmatpush1.msra.mxu0 0.0
        %316 = vmatprep.subr.mxu0 0.0
        %317 = vmatpush1.msra.mxu0 0.0
        %318 = vmatprep.subr.mxu0 0.0
        %319 = vmatpush1.msra.mxu0 0.0
        %320 = vmatprep.subr.mxu0 0.0
        %321 = vmatpush1.msra.mxu0 0.0
        %322 = vmatprep.subr.mxu0 0.0
        %323 = vmatpush1.msra.mxu0 0.0
        %324 = vmatprep.mubr.f32.mxu0 0.0
        %325 = vmatmul.mubr.f32.gmra.mrb[0].mxu0 %v251
        %v326 = vpop.f32.mrb[0].mxu0
        %v327 = vadd.f32 0.0, %v326
        %v328 = vpop.f32.mrb[0].mxu0
        %v329 = vadd.f32 0.0, %v328
        %330 = vdwg.mxu0
        %v331 = vld [vmem:[%s2] sm:$0x1]
        %v333 = vlaneseq
        %v334 = vshrl.u32 %v333, 7
        %v335 = vsub.s32 0, %v334
        %v336 = vrot.slane %v331, %v335
        %v338 = vmul.f32 %v242, %v336
        %v339 = vsel %vm249, %v338, 0.0
        %340 = vadd.xlane.f32.xlu0 %v339
        %v341 = vpop.xlane.xlu0 %340
        %v342 = vld [vmem:[#allocation7] sm:$0xff]
        %v343 = vld [vmem:[#allocation7 + $0x8] sm:$0xff]
        %v344 = vld [vmem:[#allocation7 + $0x10] sm:$0x1]
        %v346 = vsel %vm253, %v344, 0
        %348 = vmatprep.subr.mxu0 0.0
        %349 = vmatpush1.msra.mxu0 %v342
        %350 = vmatprep.subr.mxu0 0.0
        %351 = vmatpush1.msra.mxu0 %v343
        %352 = vmatprep.subr.mxu0 0.0
        %353 = vmatpush1.msra.mxu0 %v346
        %354 = vmatprep.subr.mxu0 0.0
        %355 = vmatpush1.msra.mxu0 0.0
        %356 = vmatprep.subr.mxu0 0.0
        %357 = vmatpush1.msra.mxu0 0.0
        %358 = vmatprep.subr.mxu0 0.0
        %359 = vmatpush1.msra.mxu0 0.0
        %360 = vmatprep.subr.mxu0 0.0
        %361 = vmatpush1.msra.mxu0 0.0
        %362 = vmatprep.subr.mxu0 0.0
        %363 = vmatpush1.msra.mxu0 0.0
        %364 = vmatprep.subr.mxu0 0.0
        %365 = vmatpush1.msra.mxu0 0.0
        %366 = vmatprep.subr.mxu0 0.0
        %367 = vmatpush1.msra.mxu0 0.0
        %368 = vmatprep.subr.mxu0 0.0
        %369 = vmatpush1.msra.mxu0 0.0
        %370 = vmatprep.subr.mxu0 0.0
        %371 = vmatpush1.msra.mxu0 0.0
        %372 = vmatprep.subr.mxu0 0.0
        %373 = vmatpush1.msra.mxu0 0.0
        %374 = vmatprep.subr.mxu0 0.0
        %375 = vmatpush1.msra.mxu0 0.0
        %376 = vmatprep.subr.mxu0 0.0
        %377 = vmatpush1.msra.mxu0 0.0
        %378 = vmatprep.subr.mxu0 0.0
        %379 = vmatpush1.msra.mxu0 0.0
        %380 = vmatprep.subr.mxu0 0.0
        %381 = vmatpush1.msra.mxu0 0.0
        %382 = vmatprep.subr.mxu0 0.0
        %383 = vmatpush1.msra.mxu0 0.0
        %384 = vmatprep.subr.mxu0 0.0
        %385 = vmatpush1.msra.mxu0 0.0
        %386 = vmatprep.subr.mxu0 0.0
        %387 = vmatpush1.msra.mxu0 0.0
        %388 = vmatprep.subr.mxu0 0.0
        %389 = vmatpush1.msra.mxu0 0.0
        %390 = vmatprep.subr.mxu0 0.0
        %391 = vmatpush1.msra.mxu0 0.0
        %392 = vmatprep.subr.mxu0 0.0
        %393 = vmatpush1.msra.mxu0 0.0
        %394 = vmatprep.subr.mxu0 0.0
        %395 = vmatpush1.msra.mxu0 0.0
        %396 = vmatprep.subr.mxu0 0.0
        %397 = vmatpush1.msra.mxu0 0.0
        %398 = vmatprep.subr.mxu0 0.0
        %399 = vmatpush1.msra.mxu0 0.0
        %400 = vmatprep.subr.mxu0 0.0
        %401 = vmatpush1.msra.mxu0 0.0
        %402 = vmatprep.subr.mxu0 0.0
        %403 = vmatpush1.msra.mxu0 0.0
        %404 = vmatprep.subr.mxu0 0.0
        %405 = vmatpush1.msra.mxu0 0.0
        %406 = vmatprep.subr.mxu0 0.0
        %407 = vmatpush1.msra.mxu0 0.0
        %408 = vmatprep.subr.mxu0 0.0
        %409 = vmatpush1.msra.mxu0 0.0
        %410 = vmatprep.subr.mxu0 0.0
        %411 = vmatpush1.msra.mxu0 0.0
        %412 = vmatprep.mubr.f32.mxu0 0.0
        %413 = vmatmul.mubr.f32.gmra.mrb[0].mxu0 %v251
        %v414 = vpop.f32.mrb[0].mxu0
        %v415 = vadd.f32 0.0, %v414
        %v416 = vpop.f32.mrb[0].mxu0
        %417 = vdwg.mxu0
        %v418 = vmul.f32 %v415, %v242
        %v419 = vsel %vm249, %v418, 0.0
        %420 = vadd.xlane.f32.xlu0 %v419
        %v421 = vpop.xlane.xlu0 %420
        %v422 = vmul.f32 %v341, 0.00390625
        %v423 = vmul.f32 %v421, 0.00390625
        %v424 = vmul.f32 %v422, %v422
        %v425 = vsub.f32 %v423, %v424
        %v426 = vmax.f32 %v425, 0.0
        %v427 = vadd.f32 %v426, 1e-05
        %v428 = vrsqrt.pop %v427
        %vm429 = vcmp.ge.f32.partialorder %v327, %v422
        %vm430 = vcmp.ge.f32.partialorder %v329, %v422
        %v431 = vmul.f32 %v428, 0.01
        %v432 = vsel %vm429, %v428, %v431
        %v433 = vsel %vm430, %v428, %v431
        %v434 = vsub.f32 %v327, %v422
        %v435 = vsub.f32 %v329, %v422
        %v436 = vmul.f32 %v434, %v432
        %v437 = vmul.f32 %v435, %v433
        %438 = vst [vmem:[%s241] sm:$0xff] %v436
        %439 = vst [vmem:[%s241 + $0x8] sm:$0xff] %v437
        %s440 = sand.u32 %s119, 1
        %s441 = scalar_lea.sflag [#allocation4], %s440
        %s442 = sand.u32 %s119, 1
        %s443 = smul.addr %s442, 16
        %s444 = scalar_lea.vmem [#allocation8], %s443
        // Predicated region
        $region49: #{tpu_custom_call.1} parent=35 // pred_check
          %p445 = pneg %p129
        $region50: #{tpu_custom_call.1} parent=35 // pred_check_branch
          %447 = sbr.rel (%p445) target = $region52
        $region51: #{tpu_custom_call.1} parent=35 // pred_region
          %s449 = ssub.s32 256, 256
          %450 = vsyncadd %s441, %s449
          %s451 = smul.addr %s22, 2
          %s452 = smul.addr %s451, 128
          %s453 = scalar_lea.hbm %s4, %s452
          %s455 = sshll.u32 %s444, 4
          %s456 = int_to_ptr.vmem [resolvable:$true] %s455
          %458 = dma.vmem_to_hbm [thread:$0]  %s456, 256, %s453, %s441
        $region52: #{tpu_custom_call.1} parent=35 // pred_fallthru
          _
      $region36: #{tpu_custom_call.1} parent=5 // pred_fallthru
        _
      %p459 = scmp.le.s32.totalorder 2, %s17
      // Predicated region
      $region53: #{tpu_custom_call.1} parent=5 // pred_check
        %p460 = pneg %p459
      $region54: #{tpu_custom_call.1} parent=5 // pred_check_branch
        %462 = sbr.rel (%p460) target = $region56
      $region55: #{tpu_custom_call.1} parent=5 // pred_region
        %s463 = ssub.s32 %s17, 2
        // Predicated region
        $region57: #{tpu_custom_call.1} parent=55 // pred_check
          %p464 = pneg %p135
        $region58: #{tpu_custom_call.1} parent=55 // pred_check_branch
          %466 = sbr.rel (%p464) target = $region60
        $region59: #{tpu_custom_call.1} parent=55 // pred_region
          %s467 = sand.u32 %s120, 1
          %s468 = scalar_lea.sflag [#allocation4], %s467
          %s469 = sand.u32 %s120, 1
          %s470 = smul.addr %s469, 16
          %s471 = scalar_lea.vmem [#allocation8], %s470
          %472 = dma.done %s468, 256
        $region60: #{tpu_custom_call.1} parent=55 // pred_fallthru
          _
      $region56: #{tpu_custom_call.1} parent=5 // pred_fallthru
        _
    $region6: #{tpu_custom_call.1} parent=1 // loop_footer
      %s21 = sadd.s32 1, %s17
    $region7: #{tpu_custom_call.1} parent=1 // loop_footer_branch
      %16 = sbr.rel target = $region3
    $region8: #{tpu_custom_call.1} parent=1 // loop_exit
      _
    %473 = vsyncpa [#allocation3], 1
    %s474 = scalar_lea.sflag [#allocation3], 1
    %475 = vsyncpa %s474, 1
    %476 = vsyncpa [#allocation6], 1
    %477 = vsyncpa [#allocation4], 1
    %s478 = scalar_lea.sflag [#allocation4], 1
    %479 = vsyncpa %s478, 1

</llo_original>
